<compile_context>
chip_gen: v5e
topology: v5e:2x2
jax: 0.10.0
libtpu: 0.0.40
codegen_flags: <defaults>
</compile_context>

<pallas_src>
import math

import jax
import jax.numpy as jnp
from jax import lax
from jax.experimental import pallas as pl
from jax.experimental.pallas import tpu as pltpu

LN_EPS = 1e-5


def _round_up(a, b):
    return (a + b - 1) // b * b


def _erf_approx(x):
    # Abramowitz & Stegun 7.1.26: max abs error ~1.5e-7. Uses only exp/add/mul/where,
    # all of which have native Mosaic lowerings (avoids depending on an erf primitive).
    a1, a2, a3, a4, a5 = (0.254829592, -0.284496736, 1.421413741,
                          -1.453152027, 1.061405429)
    p = 0.3275911
    ax = jnp.abs(x)
    t = 1.0 / (1.0 + p * ax)
    poly = ((((a5 * t + a4) * t + a3) * t + a2) * t + a1) * t
    y = 1.0 - poly * jnp.exp(-ax * ax)
    return jnp.where(x >= 0.0, y, -y)


def _gelu_exact(x):
    # nn.GELU(approximate='none'): 0.5 * x * (1 + erf(x / sqrt(2)))
    return 0.5 * x * (1.0 + _erf_approx(x * (1.0 / math.sqrt(2.0))))


def _make_kernel(d_actual, d_pad):
    inv_d = 1.0 / float(d_actual)

    def kernel(adj_ref, xk_ref, xi_ref, gamma_ref, beta_ref,
               w1_ref, b1_ref, w2_ref, b2_ref, out_ref, acc_ref):
        k = pl.program_id(1)

        @pl.when(k == 0)
        def _():
            acc_ref[...] = jnp.zeros_like(acc_ref)

        # ---- LayerNorm over the (real) feature dim, on this K-tile of x ----
        xk = xk_ref[...].astype(jnp.float32)
        mean = jnp.sum(xk, axis=-1, keepdims=True) * inv_d
        xc = xk - mean
        if d_pad != d_actual:
            # Zero out padded feature columns so they do not pollute the variance.
            col = lax.broadcasted_iota(jnp.int32, xk.shape, 1)
            xc = jnp.where(col < d_actual, xc, 0.0)
        var = jnp.sum(xc * xc, axis=-1, keepdims=True) * inv_d
        x_n = xc * lax.rsqrt(var + LN_EPS)
        x_n = (x_n * gamma_ref[...].astype(jnp.float32)
               + beta_ref[...].astype(jnp.float32))

        # ---- Partial graph aggregation: adj[i-tile, k-tile] @ x_norm[k-tile] ----
        acc_ref[...] += jnp.dot(adj_ref[...].astype(jnp.float32), x_n,
                                preferred_element_type=jnp.float32)

        # ---- Finalize once per row tile: FFN (Linear -> GELU -> Linear) + residual ----
        @pl.when(k == pl.num_programs(1) - 1)
        def _():
            h = acc_ref[...]
            h = jnp.dot(h, w1_ref[...].astype(jnp.float32),
                        preferred_element_type=jnp.float32)
            h = h + b1_ref[...].astype(jnp.float32)
            h = _gelu_exact(h)
            h = jnp.dot(h, w2_ref[...].astype(jnp.float32),
                        preferred_element_type=jnp.float32)
            h = h + b2_ref[...].astype(jnp.float32)
            out_ref[...] = (xi_ref[...].astype(jnp.float32) + h).astype(out_ref.dtype)

    return kernel


def residual_module_wrapper(adj, x, gamma, beta, w1, b1, w2, b2, *,
                            tm=256, tk=512):
    """adj: [N, N]; x: [N, D]; w1: [D, H] (pre-transposed), w2: [H, D]."""
    N, D = x.shape
    H = w1.shape[1]

    # Lane-dense feature dims: pad D, H to multiples of 128.
    Dp = _round_up(D, 128)
    Hp = _round_up(H, 128)

    # Tile sizes, clamped for small graphs; node axes padded to tile multiples.
    tm = min(tm, _round_up(N, 8))
    tk = min(tk, _round_up(N, 128))
    Nr = _round_up(N, tm)   # padded node-row (output) axis
    Nc = _round_up(N, tk)   # padded contraction axis

    adj_p = jnp.zeros((Nr, Nc), adj.dtype).at[:N, :N].set(adj)
    xk_p = jnp.zeros((Nc, Dp), x.dtype).at[:N, :D].set(x)    # K-tiled: LN + aggregation
    xi_p = jnp.zeros((Nr, Dp), x.dtype).at[:N, :D].set(x)    # M-tiled: residual add
    gamma_p = jnp.zeros((1, Dp), gamma.dtype).at[0, :D].set(gamma)
    beta_p = jnp.zeros((1, Dp), beta.dtype).at[0, :D].set(beta)
    w1_p = jnp.zeros((Dp, Hp), w1.dtype).at[:D, :H].set(w1)
    b1_p = jnp.zeros((1, Hp), b1.dtype).at[0, :H].set(b1)
    w2_p = jnp.zeros((Hp, Dp), w2.dtype).at[:H, :D].set(w2)
    b2_p = jnp.zeros((1, Dp), b2.dtype).at[0, :D].set(b2)

    grid = (Nr // tm, Nc // tk)

    def resident(shape):
        # Tiny parameter arrays: constant block index -> stay resident in VMEM.
        return pl.BlockSpec(shape, lambda i, k: (0, 0))

    out_p = pl.pallas_call(
        _make_kernel(D, Dp),
        out_shape=jax.ShapeDtypeStruct((Nr, Dp), x.dtype),
        grid_spec=pltpu.PrefetchScalarGridSpec(
            num_scalar_prefetch=0,
            grid=grid,
            in_specs=[
                pl.BlockSpec((tm, tk), lambda i, k: (i, k)),   # adj tile (streamed)
                pl.BlockSpec((tk, Dp), lambda i, k: (k, 0)),   # x, contraction rows
                pl.BlockSpec((tm, Dp), lambda i, k: (i, 0)),   # x, residual rows
                resident((1, Dp)),    # gamma
                resident((1, Dp)),    # beta
                resident((Dp, Hp)),   # w1
                resident((1, Hp)),    # b1
                resident((Hp, Dp)),   # w2
                resident((1, Dp)),    # b2
            ],
            out_specs=pl.BlockSpec((tm, Dp), lambda i, k: (i, 0)),
            scratch_shapes=[pltpu.VMEM((tm, Dp), jnp.float32)],
        ),
        compiler_params=pltpu.CompilerParams(
            dimension_semantics=("parallel", "arbitrary"),
            vmem_limit_bytes=48 << 20,   # leaves headroom on v7x (64 MiB/TC)
        ),
    )(adj_p, xk_p, xi_p, gamma_p, beta_p, w1_p, b1_p, w2_p, b2_p)

    return out_p[:N, :D]


def reference(adj, x, gamma, beta, w1, b1, w2, b2):
    mean = jnp.mean(x, axis=-1, keepdims=True)
    var = jnp.mean((x - mean) ** 2, axis=-1, keepdims=True)
    x_n = (x - mean) * lax.rsqrt(var + LN_EPS) * gamma + beta
    h = adj @ x_n
    h = h @ w1 + b1
    h = 0.5 * h * (1.0 + lax.erf(h / math.sqrt(2.0)))   # exact GELU
    h = h @ w2 + b2
    return x + h


if __name__ == "__main__":
    key = jax.random.PRNGKey(0)
    N, D = 64, 32              # nodes, feature dim
    H = 2 * D                  # hidden_dim_multiplier = 2

    k_adj, k_x, k_w1, k_b1, k_w2, k_b2 = jax.random.split(key, 6)

    # Dense symmetric-normalized adjacency with self-loops: D^-1/2 (A+I) D^-1/2
    a = (jax.random.uniform(k_adj, (N, N)) > 0.8).astype(jnp.float32)
    a = jnp.maximum(a, a.T) + jnp.eye(N, dtype=jnp.float32)
    deg = jnp.sum(a, axis=-1)
    dinv = 1.0 / jnp.sqrt(deg)
    adj = a * dinv[:, None] * dinv[None, :]

    x = jax.random.normal(k_x, (N, D), dtype=jnp.float32)

    # LayerNorm params (PyTorch default init: gamma=1, beta=0)
    gamma = jnp.ones((D,), jnp.float32)
    beta = jnp.zeros((D,), jnp.float32)

    # Linear params, uniform +/- 1/sqrt(fan_in) like torch, stored pre-transposed [in, out]
    w1 = jax.random.uniform(k_w1, (D, H), jnp.float32, -1.0, 1.0) / math.sqrt(D)
    b1 = jax.random.uniform(k_b1, (H,), jnp.float32, -1.0, 1.0) / math.sqrt(D)
    w2 = jax.random.uniform(k_w2, (H, D), jnp.float32, -1.0, 1.0) / math.sqrt(H)
    b2 = jax.random.uniform(k_b2, (D,), jnp.float32, -1.0, 1.0) / math.sqrt(H)

    out = residual_module_wrapper(adj, x, gamma, beta, w1, b1, w2, b2)
    out = jax.block_until_ready(out)

    ref = reference(adj, x, gamma, beta, w1, b1, w2, b2)
    assert out.shape == (N, D)
    assert jnp.allclose(out, ref, atol=1e-4, rtol=1e-4), "mismatch vs JAX reference"

    print("KERNEL_OK")
</pallas_src>

<mosaic_0001>
module attributes {stable_mosaic.version = 11 : i64} {
  func.func @kernel(%arg0: i32, %arg1: i32, %arg2: memref<64x128xf32, #tpu.memory_space<vmem>>, %arg3: memref<128x128xf32, #tpu.memory_space<vmem>>, %arg4: memref<64x128xf32, #tpu.memory_space<vmem>>, %arg5: memref<1x128xf32, #tpu.memory_space<vmem>>, %arg6: memref<1x128xf32, #tpu.memory_space<vmem>>, %arg7: memref<128x128xf32, #tpu.memory_space<vmem>>, %arg8: memref<1x128xf32, #tpu.memory_space<vmem>>, %arg9: memref<128x128xf32, #tpu.memory_space<vmem>>, %arg10: memref<1x128xf32, #tpu.memory_space<vmem>>, %arg11: memref<64x128xf32, #tpu.memory_space<vmem>>, %arg12: memref<64x128xf32, #tpu.memory_space<vmem>>) attributes {dimension_semantics = [#tpu.dimension_semantics<parallel>, #tpu.dimension_semantics<arbitrary>], iteration_bounds = array<i64: 1, 1>, scalar_prefetch = 0 : i64, scratch_operands = 1 : i64, tpu.core_type = #tpu.core_type<tc>, window_params = [{transform_indices = @transform_0, window_bounds = array<i64: 64, 128>}, {transform_indices = @transform_1, window_bounds = array<i64: 128, 128>}, {transform_indices = @transform_2, window_bounds = array<i64: 64, 128>}, {pipeline_mode = #tpu.pipeline_mode<synchronous>, transform_indices = @transform_3, window_bounds = array<i64: 1, 128>}, {pipeline_mode = #tpu.pipeline_mode<synchronous>, transform_indices = @transform_4, window_bounds = array<i64: 1, 128>}, {pipeline_mode = #tpu.pipeline_mode<synchronous>, transform_indices = @transform_5, window_bounds = array<i64: 128, 128>}, {pipeline_mode = #tpu.pipeline_mode<synchronous>, transform_indices = @transform_6, window_bounds = array<i64: 1, 128>}, {pipeline_mode = #tpu.pipeline_mode<synchronous>, transform_indices = @transform_7, window_bounds = array<i64: 128, 128>}, {pipeline_mode = #tpu.pipeline_mode<synchronous>, transform_indices = @transform_8, window_bounds = array<i64: 1, 128>}, {transform_indices = @transform_9, window_bounds = array<i64: 64, 128>}]} {
    %c0_i32 = arith.constant 0 : i32
    %0 = arith.cmpi eq, %arg1, %c0_i32 : i32
    %1 = arith.extui %0 : i1 to i32
    %c0_i32_0 = arith.constant 0 : i32
    %2 = arith.cmpi ne, %1, %c0_i32_0 : i32
    scf.if %2 {
      %cst_20 = arith.constant 0.000000e+00 : f32
      %39 = vector.broadcast %cst_20 : f32 to vector<64x128xf32>
      %c0_21 = arith.constant 0 : index
      %c0_22 = arith.constant 0 : index
      %40 = vector.load %arg12[%c0_21, %c0_22] : memref<64x128xf32, #tpu.memory_space<vmem>>, vector<64x128xf32>
      tpu.vector_store %arg12[%c0_21, %c0_22], %39 {strides = array<i32>} : memref<64x128xf32, #tpu.memory_space<vmem>>, vector<64x128xf32>,
    } else {
    }
    %c0 = arith.constant 0 : index
    %c0_1 = arith.constant 0 : index
    %3 = vector.load %arg3[%c0, %c0_1] : memref<128x128xf32, #tpu.memory_space<vmem>>, vector<128x128xf32>
    %cst = arith.constant dense<0.000000e+00> : vector<128xf32>
    %4 = vector.multi_reduction <add>, %3, %cst [1] : vector<128x128xf32> to vector<128xf32>
    %5 = vector.shape_cast %4 : vector<128xf32> to vector<128x1xf32>
    %cst_2 = arith.constant 3.125000e-02 : f32
    %6 = vector.broadcast %cst_2 : f32 to vector<128x1xf32>
    %7 = arith.mulf %5, %6 : vector<128x1xf32>
    %8 = vector.broadcast %7 : vector<128x1xf32> to vector<128x128xf32>
    %9 = arith.subf %3, %8 : vector<128x128xf32>
    %10 = tpu.iota {dimensions = array<i32: 1>} : vector<128x128xi32>
    %c32_i32 = arith.constant 32 : i32
    %11 = vector.broadcast %c32_i32 : i32 to vector<128x128xi32>
    %12 = arith.cmpi slt, %10, %11 : vector<128x128xi32>
    %cst_3 = arith.constant 0.000000e+00 : f32
    %13 = vector.broadcast %cst_3 : f32 to vector<128x128xf32>
    %14 = arith.select %12, %9, %13 : vector<128x128xi1>, vector<128x128xf32>
    %15 = arith.mulf %14, %14 : vector<128x128xf32>
    %cst_4 = arith.constant dense<0.000000e+00> : vector<128xf32>
    %16 = vector.multi_reduction <add>, %15, %cst_4 [1] : vector<128x128xf32> to vector<128xf32>
    %17 = vector.shape_cast %16 : vector<128xf32> to vector<128x1xf32>
    %cst_5 = arith.constant 3.125000e-02 : f32
    %18 = vector.broadcast %cst_5 : f32 to vector<128x1xf32>
    %19 = arith.mulf %17, %18 : vector<128x1xf32>
    %cst_6 = arith.constant 9.99999974E-6 : f32
    %20 = vector.broadcast %cst_6 : f32 to vector<128x1xf32>
    %21 = arith.addf %19, %20 : vector<128x1xf32>
    %22 = math.rsqrt %21 : vector<128x1xf32>
    %23 = vector.broadcast %22 : vector<128x1xf32> to vector<128x128xf32>
    %24 = arith.mulf %14, %23 : vector<128x128xf32>
    %c0_7 = arith.constant 0 : index
    %c0_8 = arith.constant 0 : index
    %25 = vector.load %arg5[%c0_7, %c0_8] : memref<1x128xf32, #tpu.memory_space<vmem>>, vector<1x128xf32>
    %26 = vector.broadcast %25 : vector<1x128xf32> to vector<128x128xf32>
    %27 = arith.mulf %24, %26 : vector<128x128xf32>
    %c0_9 = arith.constant 0 : index
    %c0_10 = arith.constant 0 : index
    %28 = vector.load %arg6[%c0_9, %c0_10] : memref<1x128xf32, #tpu.memory_space<vmem>>, vector<1x128xf32>
    %29 = vector.broadcast %28 : vector<1x128xf32> to vector<128x128xf32>
    %30 = arith.addf %27, %29 : vector<128x128xf32>
    %c0_11 = arith.constant 0 : index
    %c0_12 = arith.constant 0 : index
    %31 = vector.load %arg12[%c0_11, %c0_12] : memref<64x128xf32, #tpu.memory_space<vmem>>, vector<64x128xf32>
    %c0_13 = arith.constant 0 : index
    %c0_14 = arith.constant 0 : index
    %32 = vector.load %arg2[%c0_13, %c0_14] : memref<64x128xf32, #tpu.memory_space<vmem>>, vector<64x128xf32>
    %cst_15 = arith.constant dense<0.000000e+00> : vector<64x128xf32>
    %33 = tpu.matmul %32, %30, %cst_15 {dimension_numbers = #tpu.dot_dimension_numbers<[1], [0], [0], [1], [0, 0, 1, 1], [], []>} : vector<64x128xf32>, vector<128x128xf32>, vector<64x128xf32> -> vector<64x128xf32>
    %34 = arith.addf %31, %33 : vector<64x128xf32>
    %c0_16 = arith.constant 0 : index
    %c0_17 = arith.constant 0 : index
    %35 = vector.load %arg12[%c0_16, %c0_17] : memref<64x128xf32, #tpu.memory_space<vmem>>, vector<64x128xf32>
    tpu.vector_store %arg12[%c0_16, %c0_17], %34 {strides = array<i32>} : memref<64x128xf32, #tpu.memory_space<vmem>>, vector<64x128xf32>,
    %c0_i32_18 = arith.constant 0 : i32
    %36 = arith.cmpi eq, %arg1, %c0_i32_18 : i32
    %37 = arith.extui %36 : i1 to i32
    %c0_i32_19 = arith.constant 0 : i32
    %38 = arith.cmpi ne, %37, %c0_i32_19 : i32
    scf.if %38 {
      %c0_20 = arith.constant 0 : index
      %c0_21 = arith.constant 0 : index
      %39 = vector.load %arg12[%c0_20, %c0_21] : memref<64x128xf32, #tpu.memory_space<vmem>>, vector<64x128xf32>
      %c0_22 = arith.constant 0 : index
      %c0_23 = arith.constant 0 : index
      %40 = vector.load %arg7[%c0_22, %c0_23] : memref<128x128xf32, #tpu.memory_space<vmem>>, vector<128x128xf32>
      %cst_24 = arith.constant dense<0.000000e+00> : vector<64x128xf32>
      %41 = tpu.matmul %39, %40, %cst_24 {dimension_numbers = #tpu.dot_dimension_numbers<[1], [0], [0], [1], [0, 0, 1, 1], [], []>} : vector<64x128xf32>, vector<128x128xf32>, vector<64x128xf32> -> vector<64x128xf32>
      %c0_25 = arith.constant 0 : index
      %c0_26 = arith.constant 0 : index
      %42 = vector.load %arg8[%c0_25, %c0_26] : memref<1x128xf32, #tpu.memory_space<vmem>>, vector<1x128xf32>
      %43 = vector.broadcast %42 : vector<1x128xf32> to vector<64x128xf32>
      %44 = arith.addf %41, %43 : vector<64x128xf32>
      %cst_27 = arith.constant 5.000000e-01 : f32
      %45 = vector.broadcast %cst_27 : f32 to vector<64x128xf32>
      %46 = arith.mulf %45, %44 : vector<64x128xf32>
      %cst_28 = arith.constant 0.707106769 : f32
      %47 = vector.broadcast %cst_28 : f32 to vector<64x128xf32>
      %48 = arith.mulf %44, %47 : vector<64x128xf32>
      %49 = math.absf %48 : vector<64x128xf32>
      %cst_29 = arith.constant 0.327591091 : f32
      %50 = vector.broadcast %cst_29 : f32 to vector<64x128xf32>
      %51 = arith.mulf %50, %49 : vector<64x128xf32>
      %cst_30 = arith.constant 1.000000e+00 : f32
      %52 = vector.broadcast %cst_30 : f32 to vector<64x128xf32>
      %53 = arith.addf %52, %51 : vector<64x128xf32>
      %cst_31 = arith.constant 1.000000e+00 : f32
      %54 = vector.broadcast %cst_31 : f32 to vector<64x128xf32>
      %55 = arith.divf %54, %53 : vector<64x128xf32>
      %cst_32 = arith.constant 1.06140542 : f32
      %56 = vector.broadcast %cst_32 : f32 to vector<64x128xf32>
      %57 = arith.mulf %56, %55 : vector<64x128xf32>
      %cst_33 = arith.constant -1.45315206 : f32
      %58 = vector.broadcast %cst_33 : f32 to vector<64x128xf32>
      %59 = arith.addf %57, %58 : vector<64x128xf32>
      %60 = arith.mulf %59, %55 : vector<64x128xf32>
      %cst_34 = arith.constant 1.42141378 : f32
      %61 = vector.broadcast %cst_34 : f32 to vector<64x128xf32>
      %62 = arith.addf %60, %61 : vector<64x128xf32>
      %63 = arith.mulf %62, %55 : vector<64x128xf32>
      %cst_35 = arith.constant -0.284496725 : f32
      %64 = vector.broadcast %cst_35 : f32 to vector<64x128xf32>
      %65 = arith.addf %63, %64 : vector<64x128xf32>
      %66 = arith.mulf %65, %55 : vector<64x128xf32>
      %cst_36 = arith.constant 0.254829586 : f32
      %67 = vector.broadcast %cst_36 : f32 to vector<64x128xf32>
      %68 = arith.addf %66, %67 : vector<64x128xf32>
      %69 = arith.mulf %68, %55 : vector<64x128xf32>
      %cst_37 = arith.constant 0.000000e+00 : f32
      %70 = vector.broadcast %cst_37 : f32 to vector<64x128xf32>
      %71 = arith.subf %70, %49 : vector<64x128xf32>
      %72 = arith.mulf %71, %49 : vector<64x128xf32>
      %73 = math.exp %72 : vector<64x128xf32>
      %74 = arith.mulf %69, %73 : vector<64x128xf32>
      %cst_38 = arith.constant 1.000000e+00 : f32
      %75 = vector.broadcast %cst_38 : f32 to vector<64x128xf32>
      %76 = arith.subf %75, %74 : vector<64x128xf32>
      %cst_39 = arith.constant 0.000000e+00 : f32
      %77 = vector.broadcast %cst_39 : f32 to vector<64x128xf32>
      %78 = arith.cmpf oge, %48, %77 : vector<64x128xf32>
      %cst_40 = arith.constant 0.000000e+00 : f32
      %79 = vector.broadcast %cst_40 : f32 to vector<64x128xf32>
      %80 = arith.subf %79, %76 : vector<64x128xf32>
      %81 = arith.select %78, %76, %80 : vector<64x128xi1>, vector<64x128xf32>
      %cst_41 = arith.constant 1.000000e+00 : f32
      %82 = vector.broadcast %cst_41 : f32 to vector<64x128xf32>
      %83 = arith.addf %82, %81 : vector<64x128xf32>
      %84 = arith.mulf %46, %83 : vector<64x128xf32>
      %c0_42 = arith.constant 0 : index
      %c0_43 = arith.constant 0 : index
      %85 = vector.load %arg9[%c0_42, %c0_43] : memref<128x128xf32, #tpu.memory_space<vmem>>, vector<128x128xf32>
      %cst_44 = arith.constant dense<0.000000e+00> : vector<64x128xf32>
      %86 = tpu.matmul %84, %85, %cst_44 {dimension_numbers = #tpu.dot_dimension_numbers<[1], [0], [0], [1], [0, 0, 1, 1], [], []>} : vector<64x128xf32>, vector<128x128xf32>, vector<64x128xf32> -> vector<64x128xf32>
      %c0_45 = arith.constant 0 : index
      %c0_46 = arith.constant 0 : index
      %87 = vector.load %arg10[%c0_45, %c0_46] : memref<1x128xf32, #tpu.memory_space<vmem>>, vector<1x128xf32>
      %88 = vector.broadcast %87 : vector<1x128xf32> to vector<64x128xf32>
      %89 = arith.addf %86, %88 : vector<64x128xf32>
      %c0_47 = arith.constant 0 : index
      %c0_48 = arith.constant 0 : index
      %90 = vector.load %arg4[%c0_47, %c0_48] : memref<64x128xf32, #tpu.memory_space<vmem>>, vector<64x128xf32>
      %91 = arith.addf %90, %89 : vector<64x128xf32>
      %c0_49 = arith.constant 0 : index
      %c0_50 = arith.constant 0 : index
      %92 = vector.load %arg11[%c0_49, %c0_50] : memref<64x128xf32, #tpu.memory_space<vmem>>, vector<64x128xf32>
      tpu.vector_store %arg11[%c0_49, %c0_50], %91 {strides = array<i32>} : memref<64x128xf32, #tpu.memory_space<vmem>>, vector<64x128xf32>,
    } else {
    }
    return
  }
  func.func @transform_0(%arg0: i32, %arg1: i32) -> (i32, i32) {
    %c0_i32 = arith.constant 0 : i32
    return %arg0, %arg1 : i32, i32
  }
  func.func @transform_1(%arg0: i32, %arg1: i32) -> (i32, i32) {
    %c0_i32 = arith.constant 0 : i32
    %c0_i32_0 = arith.constant 0 : i32
    return %arg1, %c0_i32 : i32, i32
  }
  func.func @transform_2(%arg0: i32, %arg1: i32) -> (i32, i32) {
    %c0_i32 = arith.constant 0 : i32
    %c0_i32_0 = arith.constant 0 : i32
    return %arg0, %c0_i32 : i32, i32
  }
  func.func @transform_3(%arg0: i32, %arg1: i32) -> (i32, i32) {
    %c0_i32 = arith.constant 0 : i32
    %c0_i32_0 = arith.constant 0 : i32
    %c0_i32_1 = arith.constant 0 : i32
    return %c0_i32, %c0_i32_0 : i32, i32
  }
  func.func @transform_4(%arg0: i32, %arg1: i32) -> (i32, i32) {
    %c0_i32 = arith.constant 0 : i32
    %c0_i32_0 = arith.constant 0 : i32
    %c0_i32_1 = arith.constant 0 : i32
    return %c0_i32, %c0_i32_0 : i32, i32
  }
  func.func @transform_5(%arg0: i32, %arg1: i32) -> (i32, i32) {
    %c0_i32 = arith.constant 0 : i32
    %c0_i32_0 = arith.constant 0 : i32
    %c0_i32_1 = arith.constant 0 : i32
    return %c0_i32, %c0_i32_0 : i32, i32
  }
  func.func @transform_6(%arg0: i32, %arg1: i32) -> (i32, i32) {
    %c0_i32 = arith.constant 0 : i32
    %c0_i32_0 = arith.constant 0 : i32
    %c0_i32_1 = arith.constant 0 : i32
    return %c0_i32, %c0_i32_0 : i32, i32
  }
  func.func @transform_7(%arg0: i32, %arg1: i32) -> (i32, i32) {
    %c0_i32 = arith.constant 0 : i32
    %c0_i32_0 = arith.constant 0 : i32
    %c0_i32_1 = arith.constant 0 : i32
    return %c0_i32, %c0_i32_0 : i32, i32
  }
  func.func @transform_8(%arg0: i32, %arg1: i32) -> (i32, i32) {
    %c0_i32 = arith.constant 0 : i32
    %c0_i32_0 = arith.constant 0 : i32
    %c0_i32_1 = arith.constant 0 : i32
    return %c0_i32, %c0_i32_0 : i32, i32
  }
  func.func @transform_9(%arg0: i32, %arg1: i32) -> (i32, i32) {
    %c0_i32 = arith.constant 0 : i32
    %c0_i32_0 = arith.constant 0 : i32
    return %arg0, %c0_i32 : i32, i32
  }
}

</mosaic_0001>

<llo_original>
// kernel: tpu_custom_call.1
$region0: #{tpu_custom_call.1}
  #allocation0 [shape = 'u32[]', space=smem, size = 0x4, offset = 0x4, fixed_abs, tag = 'smem constant byte address 0x4 - core index']
  #allocation1 [shape = 'u32[72,128]{1,0:T(1,128)}', space=vmem, size = 0x9000, scoped, tag = 'internal scratch']
  #allocation2 [shape = 'f32[64,128]{1,0:T(8,128)}', space=vmem, size = 0x8000, scoped, tag = 'scratch operand']
  %s0 = inlined_call_operand.hbm [shape: f32[64,128], index: 0, kind: input, shape index: {}]
  %s1 = inlined_call_operand.hbm [shape: f32[128,128], index: 1, kind: input, shape index: {}]
  %s2 = inlined_call_operand.hbm [shape: f32[64,128], index: 2, kind: input, shape index: {}]
  %s3 = inlined_call_operand.vmem [shape: f32[1,128], index: 3, kind: input, shape index: {}]
  %s4 = inlined_call_operand.vmem [shape: f32[1,128], index: 4, kind: input, shape index: {}]
  %s5 = inlined_call_operand.hbm [shape: f32[128,128], index: 5, kind: input, shape index: {}]
  %s6 = inlined_call_operand.vmem [shape: f32[1,128], index: 6, kind: input, shape index: {}]
  %s7 = inlined_call_operand.hbm [shape: f32[128,128], index: 7, kind: input, shape index: {}]
  %s8 = inlined_call_operand.vmem [shape: f32[1,128], index: 8, kind: input, shape index: {}]
  %s9 = inlined_call_operand.hbm [shape: f32[64,128], index: 9, kind: output, shape index: {}]
  %s10 = sld [smem:[#allocation0]]
  $region74: #{tpu_custom_call.1} parent=0
    _
  %s12 = ssub.s32 1, %s10
  %s13 = scalar_select 0, %s12, %s10
  $region1: #{tpu_custom_call.1} parent=0
    #allocation3 [shape = 'u8[32768]{0}', space=vmem, size = 0x8000, scoped, tag = 'input window, operand 0, single buffered']
    #allocation4 [shape = 's32[1]{0}', space=sflag, size = 0x4, scoped, tag = 'scoped memory for tpu_custom_call.1']
    #allocation5 [shape = 's32[1]{0}', space=sflag, size = 0x4, scoped, tag = 'scoped memory for tpu_custom_call.1']
    #allocation6 [shape = 'u8[65536]{0}', space=vmem, size = 0x10000, scoped, tag = 'input window, operand 1, single buffered']
    #allocation7 [shape = 's32[1]{0}', space=sflag, size = 0x4, scoped, tag = 'scoped memory for tpu_custom_call.1']
    #allocation8 [shape = 'u8[32768]{0}', space=vmem, size = 0x8000, scoped, tag = 'input window, operand 2, single buffered']
    #allocation9 [shape = 'u8[65536]{0}', space=vmem, size = 0x10000, scoped, tag = 'input window, operand 5, single buffered']
    #allocation10 [shape = 's32[1]{0}', space=sflag, size = 0x4, scoped, tag = 'scoped memory for tpu_custom_call.1']
    #allocation11 [shape = 'u8[65536]{0}', space=vmem, size = 0x10000, scoped, tag = 'input window, operand 7, single buffered']
    #allocation12 [shape = 'u8[32768]{0}', space=vmem, size = 0x8000, scoped, tag = 'output window, operand 0, single buffered']
    %14 = vsyncpa [#allocation4], 0
    %15 = vsyncpa [#allocation7], 0
    %16 = vsyncpa [#allocation10], 0
    %17 = vsyncpa [#allocation5], 0
    // Predicated region
    $region2: #{tpu_custom_call.1} parent=1 // pred_check
      _
    $region3: #{tpu_custom_call.1} parent=1 // pred_check_branch
      %19 = sbr.rel (0) target = $region5
    $region4: #{tpu_custom_call.1} parent=1 // pred_region
      %21 = vsyncadd [#allocation4], 0
      %s22 = sshll.u32 %s0, 4
      %s23 = int_to_ptr.hbm [resolvable:$true] %s22
      %s24 = sshll.u32 [#allocation3], 4
      %s25 = int_to_ptr.vmem [resolvable:$true] %s24
      %30 = dma.hbm_to_vmem [thread:$0]  %s23, 1024, %s25, [#allocation4], 128, 128, 8
    $region5: #{tpu_custom_call.1} parent=1 // pred_fallthru
      _
    // Predicated region
    $region6: #{tpu_custom_call.1} parent=1 // pred_check
      _
    $region7: #{tpu_custom_call.1} parent=1 // pred_check_branch
      %32 = sbr.rel (0) target = $region9
    $region8: #{tpu_custom_call.1} parent=1 // pred_region
      %34 = vsyncadd [#allocation7], 0
      %s35 = sshll.u32 %s1, 4
      %s36 = int_to_ptr.hbm [resolvable:$true] %s35
      %s37 = sshll.u32 [#allocation6], 4
      %s38 = int_to_ptr.vmem [resolvable:$true] %s37
      %43 = dma.hbm_to_vmem [thread:$0]  %s36, 2048, %s38, [#allocation7], 128, 128, 8
    $region9: #{tpu_custom_call.1} parent=1 // pred_fallthru
      _
    // Predicated region
    $region10: #{tpu_custom_call.1} parent=1 // pred_check
      _
    $region11: #{tpu_custom_call.1} parent=1 // pred_check_branch
      %45 = sbr.rel (0) target = $region13
    $region12: #{tpu_custom_call.1} parent=1 // pred_region
      %47 = vsyncadd [#allocation7], 0
      %s48 = sshll.u32 %s2, 4
      %s49 = int_to_ptr.hbm [resolvable:$true] %s48
      %s50 = sshll.u32 [#allocation8], 4
      %s51 = int_to_ptr.vmem [resolvable:$true] %s50
      %56 = dma.hbm_to_vmem [thread:$0]  %s49, 1024, %s51, [#allocation7], 128, 128, 8
    $region13: #{tpu_custom_call.1} parent=1 // pred_fallthru
      _
    // Predicated region
    $region14: #{tpu_custom_call.1} parent=1 // pred_check
      _
    $region15: #{tpu_custom_call.1} parent=1 // pred_check_branch
      %58 = sbr.rel (0) target = $region17
    $region16: #{tpu_custom_call.1} parent=1 // pred_region
      _
    $region17: #{tpu_custom_call.1} parent=1 // pred_fallthru
      _
    // Predicated region
    $region18: #{tpu_custom_call.1} parent=1 // pred_check
      _
    $region19: #{tpu_custom_call.1} parent=1 // pred_check_branch
      %60 = sbr.rel (0) target = $region21
    $region20: #{tpu_custom_call.1} parent=1 // pred_region
      _
    $region21: #{tpu_custom_call.1} parent=1 // pred_fallthru
      _
    // Predicated region
    $region22: #{tpu_custom_call.1} parent=1 // pred_check
      _
    $region23: #{tpu_custom_call.1} parent=1 // pred_check_branch
      %62 = sbr.rel (0) target = $region25
    $region24: #{tpu_custom_call.1} parent=1 // pred_region
      %64 = vsyncadd [#allocation10], 0
      %s65 = sshll.u32 %s5, 4
      %s66 = int_to_ptr.hbm [resolvable:$true] %s65
      %s67 = sshll.u32 [#allocation9], 4
      %s68 = int_to_ptr.vmem [resolvable:$true] %s67
      %73 = dma.hbm_to_vmem [thread:$0]  %s66, 2048, %s68, [#allocation10], 128, 128, 8
    $region25: #{tpu_custom_call.1} parent=1 // pred_fallthru
      _
    // Predicated region
    $region26: #{tpu_custom_call.1} parent=1 // pred_check
      _
    $region27: #{tpu_custom_call.1} parent=1 // pred_check_branch
      %75 = sbr.rel (0) target = $region29
    $region28: #{tpu_custom_call.1} parent=1 // pred_region
      _
    $region29: #{tpu_custom_call.1} parent=1 // pred_fallthru
      _
    // Predicated region
    $region30: #{tpu_custom_call.1} parent=1 // pred_check
      _
    $region31: #{tpu_custom_call.1} parent=1 // pred_check_branch
      %77 = sbr.rel (0) target = $region33
    $region32: #{tpu_custom_call.1} parent=1 // pred_region
      %79 = vsyncadd [#allocation10], 0
      %s80 = sshll.u32 %s7, 4
      %s81 = int_to_ptr.hbm [resolvable:$true] %s80
      %s82 = sshll.u32 [#allocation11], 4
      %s83 = int_to_ptr.vmem [resolvable:$true] %s82
      %88 = dma.hbm_to_vmem [thread:$0]  %s81, 2048, %s83, [#allocation10], 128, 128, 8
    $region33: #{tpu_custom_call.1} parent=1 // pred_fallthru
      _
    // Predicated region
    $region34: #{tpu_custom_call.1} parent=1 // pred_check
      _
    $region35: #{tpu_custom_call.1} parent=1 // pred_check_branch
      %90 = sbr.rel (0) target = $region37
    $region36: #{tpu_custom_call.1} parent=1 // pred_region
      _
    $region37: #{tpu_custom_call.1} parent=1 // pred_fallthru
      _
    // Predicated region
    $region38: #{tpu_custom_call.1} parent=1 // pred_check
      _
    $region39: #{tpu_custom_call.1} parent=1 // pred_check_branch
      %92 = sbr.rel (0) target = $region41
    $region40: #{tpu_custom_call.1} parent=1 // pred_region
      %94 = dma.done [#allocation4], 1024
    $region41: #{tpu_custom_call.1} parent=1 // pred_fallthru
      _
    // Predicated region
    $region42: #{tpu_custom_call.1} parent=1 // pred_check
      _
    $region43: #{tpu_custom_call.1} parent=1 // pred_check_branch
      %96 = sbr.rel (0) target = $region45
    $region44: #{tpu_custom_call.1} parent=1 // pred_region
      %98 = dma.done [#allocation7], 2048
    $region45: #{tpu_custom_call.1} parent=1 // pred_fallthru
      _
    // Predicated region
    $region46: #{tpu_custom_call.1} parent=1 // pred_check
      _
    $region47: #{tpu_custom_call.1} parent=1 // pred_check_branch
      %100 = sbr.rel (0) target = $region49
    $region48: #{tpu_custom_call.1} parent=1 // pred_region
      %102 = dma.done [#allocation7], 1024
    $region49: #{tpu_custom_call.1} parent=1 // pred_fallthru
      _
    // Predicated region
    $region50: #{tpu_custom_call.1} parent=1 // pred_check
      _
    $region51: #{tpu_custom_call.1} parent=1 // pred_check_branch
      %104 = sbr.rel (0) target = $region53
    $region52: #{tpu_custom_call.1} parent=1 // pred_region
      %106 = dma.done [#allocation10], 2048
    $region53: #{tpu_custom_call.1} parent=1 // pred_fallthru
      _
    // Predicated region
    $region54: #{tpu_custom_call.1} parent=1 // pred_check
      _
    $region55: #{tpu_custom_call.1} parent=1 // pred_check_branch
      %108 = sbr.rel (0) target = $region57
    $region56: #{tpu_custom_call.1} parent=1 // pred_region
      %110 = dma.done [#allocation10], 2048
    $region57: #{tpu_custom_call.1} parent=1 // pred_fallthru
      _
    %p111 = scmp.eq.s32.totalorder 0, 0
    // Predicated region
    $region58: #{tpu_custom_call.1} parent=1 // pred_check
      %p112 = pneg %p111
    $region59: #{tpu_custom_call.1} parent=1 // pred_check_branch
      %114 = sbr.rel (%p112) target = $region61
    $region60: #{tpu_custom_call.1} parent=1 // pred_region
      %115 = vst [vmem:[#allocation2] sm:$0xff] 0.0
      %116 = vst [vmem:[#allocation2 + $0x8] sm:$0xff] 0.0
      %117 = vst [vmem:[#allocation2 + $0x10] sm:$0xff] 0.0
      %118 = vst [vmem:[#allocation2 + $0x18] sm:$0xff] 0.0
      %119 = vst [vmem:[#allocation2 + $0x20] sm:$0xff] 0.0
      %120 = vst [vmem:[#allocation2 + $0x28] sm:$0xff] 0.0
      %121 = vst [vmem:[#allocation2 + $0x30] sm:$0xff] 0.0
      %122 = vst [vmem:[#allocation2 + $0x38] sm:$0xff] 0.0
    $region61: #{tpu_custom_call.1} parent=1 // pred_fallthru
      _
    %v123 = vld [vmem:[#allocation6] sm:$0xff]
    %v124 = vld [vmem:[#allocation6 + $0x8] sm:$0xff]
    %v125 = vld [vmem:[#allocation6 + $0x10] sm:$0xff]
    %v126 = vld [vmem:[#allocation6 + $0x18] sm:$0xff]
    %v127 = vld [vmem:[#allocation6 + $0x20] sm:$0xff]
    %v128 = vld [vmem:[#allocation6 + $0x28] sm:$0xff]
    %v129 = vld [vmem:[#allocation6 + $0x30] sm:$0xff]
    %v130 = vld [vmem:[#allocation6 + $0x38] sm:$0xff]
    %v131 = vld [vmem:[#allocation6 + $0x40] sm:$0xff]
    %v132 = vld [vmem:[#allocation6 + $0x48] sm:$0xff]
    %v133 = vld [vmem:[#allocation6 + $0x50] sm:$0xff]
    %v134 = vld [vmem:[#allocation6 + $0x58] sm:$0xff]
    %v135 = vld [vmem:[#allocation6 + $0x60] sm:$0xff]
    %v136 = vld [vmem:[#allocation6 + $0x68] sm:$0xff]
    %v137 = vld [vmem:[#allocation6 + $0x70] sm:$0xff]
    %v138 = vld [vmem:[#allocation6 + $0x78] sm:$0xff]
    %139 = vadd.xlane.f32.xlu0 %v123
    %v140 = vpop.xlane.xlu0 %139
    %141 = vadd.xlane.f32.xlu0 %v124
    %v142 = vpop.xlane.xlu0 %141
    %143 = vadd.xlane.f32.xlu0 %v125
    %v144 = vpop.xlane.xlu0 %143
    %145 = vadd.xlane.f32.xlu0 %v126
    %v146 = vpop.xlane.xlu0 %145
    %147 = vadd.xlane.f32.xlu0 %v127
    %v148 = vpop.xlane.xlu0 %147
    %149 = vadd.xlane.f32.xlu0 %v128
    %v150 = vpop.xlane.xlu0 %149
    %151 = vadd.xlane.f32.xlu0 %v129
    %v152 = vpop.xlane.xlu0 %151
    %153 = vadd.xlane.f32.xlu0 %v130
    %v154 = vpop.xlane.xlu0 %153
    %155 = vadd.xlane.f32.xlu0 %v131
    %v156 = vpop.xlane.xlu0 %155
    %157 = vadd.xlane.f32.xlu0 %v132
    %v158 = vpop.xlane.xlu0 %157
    %159 = vadd.xlane.f32.xlu0 %v133
    %v160 = vpop.xlane.xlu0 %159
    %161 = vadd.xlane.f32.xlu0 %v134
    %v162 = vpop.xlane.xlu0 %161
    %163 = vadd.xlane.f32.xlu0 %v135
    %v164 = vpop.xlane.xlu0 %163
    %165 = vadd.xlane.f32.xlu0 %v136
    %v166 = vpop.xlane.xlu0 %165
    %167 = vadd.xlane.f32.xlu0 %v137
    %v168 = vpop.xlane.xlu0 %167
    %169 = vadd.xlane.f32.xlu0 %v138
    %v170 = vpop.xlane.xlu0 %169
    %v171 = vmul.f32 %v140, 0.03125
    %v172 = vmul.f32 %v142, 0.03125
    %v173 = vmul.f32 %v144, 0.03125
    %v174 = vmul.f32 %v146, 0.03125
    %v175 = vmul.f32 %v148, 0.03125
    %v176 = vmul.f32 %v150, 0.03125
    %v177 = vmul.f32 %v152, 0.03125
    %v178 = vmul.f32 %v154, 0.03125
    %v179 = vmul.f32 %v156, 0.03125
    %v180 = vmul.f32 %v158, 0.03125
    %v181 = vmul.f32 %v160, 0.03125
    %v182 = vmul.f32 %v162, 0.03125
    %v183 = vmul.f32 %v164, 0.03125
    %v184 = vmul.f32 %v166, 0.03125
    %v185 = vmul.f32 %v168, 0.03125
    %v186 = vmul.f32 %v170, 0.03125
    %v187 = vsub.f32 %v123, %v171
    %v188 = vsub.f32 %v124, %v172
    %v189 = vsub.f32 %v125, %v173
    %v190 = vsub.f32 %v126, %v174
    %v191 = vsub.f32 %v127, %v175
    %v192 = vsub.f32 %v128, %v176
    %v193 = vsub.f32 %v129, %v177
    %v194 = vsub.f32 %v130, %v178
    %v195 = vsub.f32 %v131, %v179
    %v196 = vsub.f32 %v132, %v180
    %v197 = vsub.f32 %v133, %v181
    %v198 = vsub.f32 %v134, %v182
    %v199 = vsub.f32 %v135, %v183
    %v200 = vsub.f32 %v136, %v184
    %v201 = vsub.f32 %v137, %v185
    %v202 = vsub.f32 %v138, %v186
    %v203 = vlaneseq
    %v204 = vand.u32 %v203, 127
    %vm205 = vcmp.lt.s32.totalorder %v204, 32
    %v206 = vsel %vm205, %v187, 0.0
    %v207 = vsel %vm205, %v188, 0.0
    %v208 = vsel %vm205, %v189, 0.0
    %v209 = vsel %vm205, %v190, 0.0
    %v210 = vsel %vm205, %v191, 0.0
    %v211 = vsel %vm205, %v192, 0.0
    %v212 = vsel %vm205, %v193, 0.0
    %v213 = vsel %vm205, %v194, 0.0
    %v214 = vsel %vm205, %v195, 0.0
    %v215 = vsel %vm205, %v196, 0.0
    %v216 = vsel %vm205, %v197, 0.0
    %v217 = vsel %vm205, %v198, 0.0
    %v218 = vsel %vm205, %v199, 0.0
    %v219 = vsel %vm205, %v200, 0.0
    %v220 = vsel %vm205, %v201, 0.0
    %v221 = vsel %vm205, %v202, 0.0
    %v222 = vmul.f32 %v206, %v206
    %v223 = vmul.f32 %v207, %v207
    %v224 = vmul.f32 %v208, %v208
    %v225 = vmul.f32 %v209, %v209
    %v226 = vmul.f32 %v210, %v210
    %v227 = vmul.f32 %v211, %v211
    %v228 = vmul.f32 %v212, %v212
    %v229 = vmul.f32 %v213, %v213
    %v230 = vmul.f32 %v214, %v214
    %v231 = vmul.f32 %v215, %v215
    %v232 = vmul.f32 %v216, %v216
    %v233 = vmul.f32 %v217, %v217
    %v234 = vmul.f32 %v218, %v218
    %v235 = vmul.f32 %v219, %v219
    %v236 = vmul.f32 %v220, %v220
    %v237 = vmul.f32 %v221, %v221
    %238 = vadd.xlane.f32.xlu0 %v222
    %v239 = vpop.xlane.xlu0 %238
    %240 = vadd.xlane.f32.xlu0 %v223
    %v241 = vpop.xlane.xlu0 %240
    %242 = vadd.xlane.f32.xlu0 %v224
    %v243 = vpop.xlane.xlu0 %242
    %244 = vadd.xlane.f32.xlu0 %v225
    %v245 = vpop.xlane.xlu0 %244
    %246 = vadd.xlane.f32.xlu0 %v226
    %v247 = vpop.xlane.xlu0 %246
    %248 = vadd.xlane.f32.xlu0 %v227
    %v249 = vpop.xlane.xlu0 %248
    %250 = vadd.xlane.f32.xlu0 %v228
    %v251 = vpop.xlane.xlu0 %250
    %252 = vadd.xlane.f32.xlu0 %v229
    %v253 = vpop.xlane.xlu0 %252
    %254 = vadd.xlane.f32.xlu0 %v230
    %v255 = vpop.xlane.xlu0 %254
    %256 = vadd.xlane.f32.xlu0 %v231
    %v257 = vpop.xlane.xlu0 %256
    %258 = vadd.xlane.f32.xlu0 %v232
    %v259 = vpop.xlane.xlu0 %258
    %260 = vadd.xlane.f32.xlu0 %v233
    %v261 = vpop.xlane.xlu0 %260
    %262 = vadd.xlane.f32.xlu0 %v234
    %v263 = vpop.xlane.xlu0 %262
    %264 = vadd.xlane.f32.xlu0 %v235
    %v265 = vpop.xlane.xlu0 %264
    %266 = vadd.xlane.f32.xlu0 %v236
    %v267 = vpop.xlane.xlu0 %266
    %268 = vadd.xlane.f32.xlu0 %v237
    %v269 = vpop.xlane.xlu0 %268
    %v270 = vmul.f32 %v239, 0.03125
    %v271 = vmul.f32 %v241, 0.03125
    %v272 = vmul.f32 %v243, 0.03125
    %v273 = vmul.f32 %v245, 0.03125
    %v274 = vmul.f32 %v247, 0.03125
    %v275 = vmul.f32 %v249, 0.03125
    %v276 = vmul.f32 %v251, 0.03125
    %v277 = vmul.f32 %v253, 0.03125
    %v278 = vmul.f32 %v255, 0.03125
    %v279 = vmul.f32 %v257, 0.03125
    %v280 = vmul.f32 %v259, 0.03125
    %v281 = vmul.f32 %v261, 0.03125
    %v282 = vmul.f32 %v263, 0.03125
    %v283 = vmul.f32 %v265, 0.03125
    %v284 = vmul.f32 %v267, 0.03125
    %v285 = vmul.f32 %v269, 0.03125
    %v286 = vadd.f32 %v270, 1e-05
    %v287 = vadd.f32 %v271, 1e-05
    %v288 = vadd.f32 %v272, 1e-05
    %v289 = vadd.f32 %v273, 1e-05
    %v290 = vadd.f32 %v274, 1e-05
    %v291 = vadd.f32 %v275, 1e-05
    %v292 = vadd.f32 %v276, 1e-05
    %v293 = vadd.f32 %v277, 1e-05
    %v294 = vadd.f32 %v278, 1e-05
    %v295 = vadd.f32 %v279, 1e-05
    %v296 = vadd.f32 %v280, 1e-05
    %v297 = vadd.f32 %v281, 1e-05
    %v298 = vadd.f32 %v282, 1e-05
    %v299 = vadd.f32 %v283, 1e-05
    %v300 = vadd.f32 %v284, 1e-05
    %v301 = vadd.f32 %v285, 1e-05
    %v302 = vrsqrt.pop %v286
    %v303 = vmul.f32 %v302, %v286
    %v304 = vmul.f32 %v303, %v302
    %v305 = vmul.f32 0.5, %v304
    %v306 = vsub.f32 1.5, %v305
    %v307 = vmul.f32 %v302, %v306
    %vm308 = vweird.f32 %v286
    %vm309 = vweird.f32 %v302
    %vm310 = vmor %vm308, %vm309
    %v311 = vsel %vm310, %v302, %v307
    %v312 = vrsqrt.pop %v287
    %v313 = vmul.f32 %v312, %v287
    %v314 = vmul.f32 %v313, %v312
    %v315 = vmul.f32 0.5, %v314
    %v316 = vsub.f32 1.5, %v315
    %v317 = vmul.f32 %v312, %v316
    %vm318 = vweird.f32 %v287
    %vm319 = vweird.f32 %v312
    %vm320 = vmor %vm318, %vm319
    %v321 = vsel %vm320, %v312, %v317
    %v322 = vrsqrt.pop %v288
    %v323 = vmul.f32 %v322, %v288
    %v324 = vmul.f32 %v323, %v322
    %v325 = vmul.f32 0.5, %v324
    %v326 = vsub.f32 1.5, %v325
    %v327 = vmul.f32 %v322, %v326
    %vm328 = vweird.f32 %v288
    %vm329 = vweird.f32 %v322
    %vm330 = vmor %vm328, %vm329
    %v331 = vsel %vm330, %v322, %v327
    %v332 = vrsqrt.pop %v289
    %v333 = vmul.f32 %v332, %v289
    %v334 = vmul.f32 %v333, %v332
    %v335 = vmul.f32 0.5, %v334
    %v336 = vsub.f32 1.5, %v335
    %v337 = vmul.f32 %v332, %v336
    %vm338 = vweird.f32 %v289
    %vm339 = vweird.f32 %v332
    %vm340 = vmor %vm338, %vm339
    %v341 = vsel %vm340, %v332, %v337
    %v342 = vrsqrt.pop %v290
    %v343 = vmul.f32 %v342, %v290
    %v344 = vmul.f32 %v343, %v342
    %v345 = vmul.f32 0.5, %v344
    %v346 = vsub.f32 1.5, %v345
    %v347 = vmul.f32 %v342, %v346
    %vm348 = vweird.f32 %v290
    %vm349 = vweird.f32 %v342
    %vm350 = vmor %vm348, %vm349
    %v351 = vsel %vm350, %v342, %v347
    %v352 = vrsqrt.pop %v291
    %v353 = vmul.f32 %v352, %v291
    %v354 = vmul.f32 %v353, %v352
    %v355 = vmul.f32 0.5, %v354
    %v356 = vsub.f32 1.5, %v355
    %v357 = vmul.f32 %v352, %v356
    %vm358 = vweird.f32 %v291
    %vm359 = vweird.f32 %v352
    %vm360 = vmor %vm358, %vm359
    %v361 = vsel %vm360, %v352, %v357
    %v362 = vrsqrt.pop %v292
    %v363 = vmul.f32 %v362, %v292
    %v364 = vmul.f32 %v363, %v362
    %v365 = vmul.f32 0.5, %v364
    %v366 = vsub.f32 1.5, %v365
    %v367 = vmul.f32 %v362, %v366
    %vm368 = vweird.f32 %v292
    %vm369 = vweird.f32 %v362
    %vm370 = vmor %vm368, %vm369
    %v371 = vsel %vm370, %v362, %v367
    %v372 = vrsqrt.pop %v293
    %v373 = vmul.f32 %v372, %v293
    %v374 = vmul.f32 %v373, %v372
    %v375 = vmul.f32 0.5, %v374
    %v376 = vsub.f32 1.5, %v375
    %v377 = vmul.f32 %v372, %v376
    %vm378 = vweird.f32 %v293
    %vm379 = vweird.f32 %v372
    %vm380 = vmor %vm378, %vm379
    %v381 = vsel %vm380, %v372, %v377
    %v382 = vrsqrt.pop %v294
    %v383 = vmul.f32 %v382, %v294
    %v384 = vmul.f32 %v383, %v382
    %v385 = vmul.f32 0.5, %v384
    %v386 = vsub.f32 1.5, %v385
    %v387 = vmul.f32 %v382, %v386
    %vm388 = vweird.f32 %v294
    %vm389 = vweird.f32 %v382
    %vm390 = vmor %vm388, %vm389
    %v391 = vsel %vm390, %v382, %v387
    %v392 = vrsqrt.pop %v295
    %v393 = vmul.f32 %v392, %v295
    %v394 = vmul.f32 %v393, %v392
    %v395 = vmul.f32 0.5, %v394
    %v396 = vsub.f32 1.5, %v395
    %v397 = vmul.f32 %v392, %v396
    %vm398 = vweird.f32 %v295
    %vm399 = vweird.f32 %v392
    %vm400 = vmor %vm398, %vm399
    %v401 = vsel %vm400, %v392, %v397
    %v402 = vrsqrt.pop %v296
    %v403 = vmul.f32 %v402, %v296
    %v404 = vmul.f32 %v403, %v402
    %v405 = vmul.f32 0.5, %v404
    %v406 = vsub.f32 1.5, %v405
    %v407 = vmul.f32 %v402, %v406
    %vm408 = vweird.f32 %v296
    %vm409 = vweird.f32 %v402
    %vm410 = vmor %vm408, %vm409
    %v411 = vsel %vm410, %v402, %v407
    %v412 = vrsqrt.pop %v297
    %v413 = vmul.f32 %v412, %v297
    %v414 = vmul.f32 %v413, %v412
    %v415 = vmul.f32 0.5, %v414
    %v416 = vsub.f32 1.5, %v415
    %v417 = vmul.f32 %v412, %v416
    %vm418 = vweird.f32 %v297
    %vm419 = vweird.f32 %v412
    %vm420 = vmor %vm418, %vm419
    %v421 = vsel %vm420, %v412, %v417
    %v422 = vrsqrt.pop %v298
    %v423 = vmul.f32 %v422, %v298
    %v424 = vmul.f32 %v423, %v422
    %v425 = vmul.f32 0.5, %v424
    %v426 = vsub.f32 1.5, %v425
    %v427 = vmul.f32 %v422, %v426
    %vm428 = vweird.f32 %v298
    %vm429 = vweird.f32 %v422
    %vm430 = vmor %vm428, %vm429
    %v431 = vsel %vm430, %v422, %v427
    %v432 = vrsqrt.pop %v299
    %v433 = vmul.f32 %v432, %v299
    %v434 = vmul.f32 %v433, %v432
    %v435 = vmul.f32 0.5, %v434
    %v436 = vsub.f32 1.5, %v435
    %v437 = vmul.f32 %v432, %v436
    %vm438 = vweird.f32 %v299
    %vm439 = vweird.f32 %v432
    %vm440 = vmor %vm438, %vm439
    %v441 = vsel %vm440, %v432, %v437
    %v442 = vrsqrt.pop %v300
    %v443 = vmul.f32 %v442, %v300
    %v444 = vmul.f32 %v443, %v442
    %v445 = vmul.f32 0.5, %v444
    %v446 = vsub.f32 1.5, %v445
    %v447 = vmul.f32 %v442, %v446
    %vm448 = vweird.f32 %v300
    %vm449 = vweird.f32 %v442
    %vm450 = vmor %vm448, %vm449
    %v451 = vsel %vm450, %v442, %v447
    %v452 = vrsqrt.pop %v301
    %v453 = vmul.f32 %v452, %v301
    %v454 = vmul.f32 %v453, %v452
    %v455 = vmul.f32 0.5, %v454
    %v456 = vsub.f32 1.5, %v455
    %v457 = vmul.f32 %v452, %v456
    %vm458 = vweird.f32 %v301
    %vm459 = vweird.f32 %v452
    %vm460 = vmor %vm458, %vm459
    %v461 = vsel %vm460, %v452, %v457
    %v462 = vmul.f32 %v206, %v311
    %v463 = vmul.f32 %v207, %v321
    %v464 = vmul.f32 %v208, %v331
    %v465 = vmul.f32 %v209, %v341
    %v466 = vmul.f32 %v210, %v351
    %v467 = vmul.f32 %v211, %v361
    %v468 = vmul.f32 %v212, %v371
    %v469 = vmul.f32 %v213, %v381
    %v470 = vmul.f32 %v214, %v391
    %v471 = vmul.f32 %v215, %v401
    %v472 = vmul.f32 %v216, %v411
    %v473 = vmul.f32 %v217, %v421
    %v474 = vmul.f32 %v218, %v431
    %v475 = vmul.f32 %v219, %v441
    %v476 = vmul.f32 %v220, %v451
    %v477 = vmul.f32 %v221, %v461
    %v478 = vld [vmem:[%s3] sm:$0x1]
    %v480 = vperm.slane %v478, 0
    %v482 = vmul.f32 %v462, %v480
    %v483 = vmul.f32 %v463, %v480
    %v484 = vmul.f32 %v464, %v480
    %v485 = vmul.f32 %v465, %v480
    %v486 = vmul.f32 %v466, %v480
    %v487 = vmul.f32 %v467, %v480
    %v488 = vmul.f32 %v468, %v480
    %v489 = vmul.f32 %v469, %v480
    %v490 = vmul.f32 %v470, %v480
    %v491 = vmul.f32 %v471, %v480
    %v492 = vmul.f32 %v472, %v480
    %v493 = vmul.f32 %v473, %v480
    %v494 = vmul.f32 %v474, %v480
    %v495 = vmul.f32 %v475, %v480
    %v496 = vmul.f32 %v476, %v480
    %v497 = vmul.f32 %v477, %v480
    %v498 = vld [vmem:[%s4] sm:$0x1]
    %v500 = vperm.slane %v498, 0
    %v502 = vadd.f32 %v482, %v500
    %v503 = vadd.f32 %v483, %v500
    %v504 = vadd.f32 %v484, %v500
    %v505 = vadd.f32 %v485, %v500
    %v506 = vadd.f32 %v486, %v500
    %v507 = vadd.f32 %v487, %v500
    %v508 = vadd.f32 %v488, %v500
    %v509 = vadd.f32 %v489, %v500
    %v510 = vadd.f32 %v490, %v500
    %v511 = vadd.f32 %v491, %v500
    %v512 = vadd.f32 %v492, %v500
    %v513 = vadd.f32 %v493, %v500
    %v514 = vadd.f32 %v494, %v500
    %v515 = vadd.f32 %v495, %v500
    %v516 = vadd.f32 %v496, %v500
    %v517 = vadd.f32 %v497, %v500
    %v518 = vld [vmem:[#allocation2] sm:$0xff]
    %v519 = vld [vmem:[#allocation2 + $0x8] sm:$0xff]
    %v520 = vld [vmem:[#allocation2 + $0x10] sm:$0xff]
    %v521 = vld [vmem:[#allocation2 + $0x18] sm:$0xff]
    %v522 = vld [vmem:[#allocation2 + $0x20] sm:$0xff]
    %v523 = vld [vmem:[#allocation2 + $0x28] sm:$0xff]
    %v524 = vld [vmem:[#allocation2 + $0x30] sm:$0xff]
    %v525 = vld [vmem:[#allocation2 + $0x38] sm:$0xff]
    %v526 = vld [vmem:[#allocation3] sm:$0xff]
    %v527 = vld [vmem:[#allocation3 + $0x8] sm:$0xff]
    %v528 = vld [vmem:[#allocation3 + $0x10] sm:$0xff]
    %v529 = vld [vmem:[#allocation3 + $0x18] sm:$0xff]
    %v530 = vld [vmem:[#allocation3 + $0x20] sm:$0xff]
    %v531 = vld [vmem:[#allocation3 + $0x28] sm:$0xff]
    %v532 = vld [vmem:[#allocation3 + $0x30] sm:$0xff]
    %v533 = vld [vmem:[#allocation3 + $0x38] sm:$0xff]
    %534 = vmatpush.msra.mxu0 %v517
    %535 = vmatpush.msra.mxu0 %v516
    %536 = vmatpush.msra.mxu0 %v515
    %537 = vmatpush.msra.mxu0 %v514
    %538 = vmatpush.msra.mxu0 %v513
    %539 = vmatpush.msra.mxu0 %v512
    %540 = vmatpush.msra.mxu0 %v511
    %541 = vmatpush.msra.mxu0 %v510
    %542 = vmatpush.msra.mxu0 %v509
    %543 = vmatpush.msra.mxu0 %v508
    %544 = vmatpush.msra.mxu0 %v507
    %545 = vmatpush.msra.mxu0 %v506
    %546 = vmatpush.msra.mxu0 %v505
    %547 = vmatpush.msra.mxu0 %v504
    %548 = vmatpush.msra.mxu0 %v503
    %549 = vmatpush.msra.mxu0 %v502
    %550 = vmatmul.f32.gmra.mxu0 %v526
    %v551 = vpop.f32.mrf.mxu0
    %v552 = vadd.f32 0.0, %v551
    %553 = vmatmul.f32.gmra.mxu0 %v527
    %v554 = vpop.f32.mrf.mxu0
    %v555 = vadd.f32 0.0, %v554
    %556 = vmatmul.f32.gmra.mxu0 %v528
    %v557 = vpop.f32.mrf.mxu0
    %v558 = vadd.f32 0.0, %v557
    %559 = vmatmul.f32.gmra.mxu0 %v529
    %v560 = vpop.f32.mrf.mxu0
    %v561 = vadd.f32 0.0, %v560
    %562 = vmatmul.f32.gmra.mxu0 %v530
    %v563 = vpop.f32.mrf.mxu0
    %v564 = vadd.f32 0.0, %v563
    %565 = vmatmul.f32.gmra.mxu0 %v531
    %v566 = vpop.f32.mrf.mxu0
    %v567 = vadd.f32 0.0, %v566
    %568 = vmatmul.f32.gmra.mxu0 %v532
    %v569 = vpop.f32.mrf.mxu0
    %v570 = vadd.f32 0.0, %v569
    %571 = vmatmul.f32.gmra.mxu0 %v533
    %v572 = vpop.f32.mrf.mxu0
    %v573 = vadd.f32 0.0, %v572
    %574 = vdwg.mxu0
    %v575 = vadd.f32 %v518, %v552
    %v576 = vadd.f32 %v519, %v555
    %v577 = vadd.f32 %v520, %v558
    %v578 = vadd.f32 %v521, %v561
    %v579 = vadd.f32 %v522, %v564
    %v580 = vadd.f32 %v523, %v567
    %v581 = vadd.f32 %v524, %v570
    %v582 = vadd.f32 %v525, %v573
    %583 = vst [vmem:[#allocation2] sm:$0xff] %v575
    %584 = vst [vmem:[#allocation2 + $0x8] sm:$0xff] %v576
    %585 = vst [vmem:[#allocation2 + $0x10] sm:$0xff] %v577
    %586 = vst [vmem:[#allocation2 + $0x18] sm:$0xff] %v578
    %587 = vst [vmem:[#allocation2 + $0x20] sm:$0xff] %v579
    %588 = vst [vmem:[#allocation2 + $0x28] sm:$0xff] %v580
    %589 = vst [vmem:[#allocation2 + $0x30] sm:$0xff] %v581
    %590 = vst [vmem:[#allocation2 + $0x38] sm:$0xff] %v582
    // Predicated region
    $region62: #{tpu_custom_call.1} parent=1 // pred_check
      %p591 = pneg %p111
    $region63: #{tpu_custom_call.1} parent=1 // pred_check_branch
      %593 = sbr.rel (%p591) target = $region65
    $region64: #{tpu_custom_call.1} parent=1 // pred_region
      %v594 = vld [vmem:[#allocation2] sm:$0xff]
      %v595 = vld [vmem:[#allocation2 + $0x8] sm:$0xff]
      %v596 = vld [vmem:[#allocation2 + $0x10] sm:$0xff]
      %v597 = vld [vmem:[#allocation2 + $0x18] sm:$0xff]
      %v598 = vld [vmem:[#allocation2 + $0x20] sm:$0xff]
      %v599 = vld [vmem:[#allocation2 + $0x28] sm:$0xff]
      %v600 = vld [vmem:[#allocation2 + $0x30] sm:$0xff]
      %v601 = vld [vmem:[#allocation2 + $0x38] sm:$0xff]
      %v602 = vld [vmem:[#allocation9] sm:$0xff]
      %v603 = vld [vmem:[#allocation9 + $0x8] sm:$0xff]
      %v604 = vld [vmem:[#allocation9 + $0x10] sm:$0xff]
      %v605 = vld [vmem:[#allocation9 + $0x18] sm:$0xff]
      %v606 = vld [vmem:[#allocation9 + $0x20] sm:$0xff]
      %v607 = vld [vmem:[#allocation9 + $0x28] sm:$0xff]
      %v608 = vld [vmem:[#allocation9 + $0x30] sm:$0xff]
      %v609 = vld [vmem:[#allocation9 + $0x38] sm:$0xff]
      %v610 = vld [vmem:[#allocation9 + $0x40] sm:$0xff]
      %v611 = vld [vmem:[#allocation9 + $0x48] sm:$0xff]
      %v612 = vld [vmem:[#allocation9 + $0x50] sm:$0xff]
      %v613 = vld [vmem:[#allocation9 + $0x58] sm:$0xff]
      %v614 = vld [vmem:[#allocation9 + $0x60] sm:$0xff]
      %v615 = vld [vmem:[#allocation9 + $0x68] sm:$0xff]
      %v616 = vld [vmem:[#allocation9 + $0x70] sm:$0xff]
      %v617 = vld [vmem:[#allocation9 + $0x78] sm:$0xff]
      %v618 = vld [vmem:[%s6] sm:$0x1]
      %v620 = vperm.slane %v618, 0
      %622 = vmatpush.msra.mxu0 %v617
      %623 = vmatpush.msra.mxu0 %v616
      %624 = vmatpush.msra.mxu0 %v615
      %625 = vmatpush.msra.mxu0 %v614
      %626 = vmatpush.msra.mxu0 %v613
      %627 = vmatpush.msra.mxu0 %v612
      %628 = vmatpush.msra.mxu0 %v611
      %629 = vmatpush.msra.mxu0 %v610
      %630 = vmatpush.msra.mxu0 %v609
      %631 = vmatpush.msra.mxu0 %v608
      %632 = vmatpush.msra.mxu0 %v607
      %633 = vmatpush.msra.mxu0 %v606
      %634 = vmatpush.msra.mxu0 %v605
      %635 = vmatpush.msra.mxu0 %v604
      %636 = vmatpush.msra.mxu0 %v603
      %637 = vmatpush.msra.mxu0 %v602
      %638 = vmatmul.f32.gmra.mxu0 %v594
      %v639 = vpop.f32.mrf.mxu0
      %v640 = vadd.f32 %v620, %v639
      %641 = vmatmul.f32.gmra.mxu0 %v595
      %v642 = vpop.f32.mrf.mxu0
      %v643 = vadd.f32 %v620, %v642
      %644 = vmatmul.f32.gmra.mxu0 %v596
      %v645 = vpop.f32.mrf.mxu0
      %v646 = vadd.f32 %v620, %v645
      %647 = vmatmul.f32.gmra.mxu0 %v597
      %v648 = vpop.f32.mrf.mxu0
      %v649 = vadd.f32 %v620, %v648
      %650 = vmatmul.f32.gmra.mxu0 %v598
      %v651 = vpop.f32.mrf.mxu0
      %v652 = vadd.f32 %v620, %v651
      %653 = vmatmul.f32.gmra.mxu0 %v599
      %v654 = vpop.f32.mrf.mxu0
      %v655 = vadd.f32 %v620, %v654
      %656 = vmatmul.f32.gmra.mxu0 %v600
      %v657 = vpop.f32.mrf.mxu0
      %v658 = vadd.f32 %v620, %v657
      %659 = vmatmul.f32.gmra.mxu0 %v601
      %v660 = vpop.f32.mrf.mxu0
      %v661 = vadd.f32 %v620, %v660
      %662 = vdwg.mxu0
      %v663 = vmul.f32 %v640, 0.5
      %v664 = vmul.f32 %v643, 0.5
      %v665 = vmul.f32 %v646, 0.5
      %v666 = vmul.f32 %v649, 0.5
      %v667 = vmul.f32 %v652, 0.5
      %v668 = vmul.f32 %v655, 0.5
      %v669 = vmul.f32 %v658, 0.5
      %v670 = vmul.f32 %v661, 0.5
      %v671 = vmul.f32 %v640, 0.70710677
      %v672 = vmul.f32 %v643, 0.70710677
      %v673 = vmul.f32 %v646, 0.70710677
      %v674 = vmul.f32 %v649, 0.70710677
      %v675 = vmul.f32 %v652, 0.70710677
      %v676 = vmul.f32 %v655, 0.70710677
      %v677 = vmul.f32 %v658, 0.70710677
      %v678 = vmul.f32 %v661, 0.70710677
      %v679 = vand.u32 2147483647, %v671
      %v680 = vand.u32 2147483647, %v672
      %v681 = vand.u32 2147483647, %v673
      %v682 = vand.u32 2147483647, %v674
      %v683 = vand.u32 2147483647, %v675
      %v684 = vand.u32 2147483647, %v676
      %v685 = vand.u32 2147483647, %v677
      %v686 = vand.u32 2147483647, %v678
      %v687 = vmul.f32 %v679, 0.3275911
      %v688 = vmul.f32 %v680, 0.3275911
      %v689 = vmul.f32 %v681, 0.3275911
      %v690 = vmul.f32 %v682, 0.3275911
      %v691 = vmul.f32 %v683, 0.3275911
      %v692 = vmul.f32 %v684, 0.3275911
      %v693 = vmul.f32 %v685, 0.3275911
      %v694 = vmul.f32 %v686, 0.3275911
      %v695 = vadd.f32 %v687, 1.0
      %v696 = vadd.f32 %v688, 1.0
      %v697 = vadd.f32 %v689, 1.0
      %v698 = vadd.f32 %v690, 1.0
      %v699 = vadd.f32 %v691, 1.0
      %v700 = vadd.f32 %v692, 1.0
      %v701 = vadd.f32 %v693, 1.0
      %v702 = vadd.f32 %v694, 1.0
      %v703 = vrcp.pop %v695
      %v704 = vmul.f32 %v695, %v703
      %v705 = vsub.f32 1.0, %v704
      %v706 = vmul.f32 %v703, %v705
      %v707 = vadd.f32 %v703, %v706
      %vm708 = vweird.f32 %v695
      %vm709 = vweird.f32 %v703
      %vm710 = vmor %vm708, %vm709
      %v711 = vsel %vm710, %v703, %v707
      %v712 = vand.u32 2147483647, %v695
      %vm713 = vcmp.eq.f32.partialorder %v712, 8.507059e+37
      %v714 = vand.u32 %v695, 2147483648
      %v715 = vor.u32 1.1754944e-38, %v714
      %v716 = vsel %vm713, %v715, %v711
      %v717 = vmul.f32 1.0, %v716
      %v718 = vrcp.pop %v696
      %v719 = vmul.f32 %v696, %v718
      %v720 = vsub.f32 1.0, %v719
      %v721 = vmul.f32 %v718, %v720
      %v722 = vadd.f32 %v718, %v721
      %vm723 = vweird.f32 %v696
      %vm724 = vweird.f32 %v718
      %vm725 = vmor %vm723, %vm724
      %v726 = vsel %vm725, %v718, %v722
      %v727 = vand.u32 2147483647, %v696
      %vm728 = vcmp.eq.f32.partialorder %v727, 8.507059e+37
      %v729 = vand.u32 %v696, 2147483648
      %v730 = vor.u32 1.1754944e-38, %v729
      %v731 = vsel %vm728, %v730, %v726
      %v732 = vmul.f32 1.0, %v731
      %v733 = vrcp.pop %v697
      %v734 = vmul.f32 %v697, %v733
      %v735 = vsub.f32 1.0, %v734
      %v736 = vmul.f32 %v733, %v735
      %v737 = vadd.f32 %v733, %v736
      %vm738 = vweird.f32 %v697
      %vm739 = vweird.f32 %v733
      %vm740 = vmor %vm738, %vm739
      %v741 = vsel %vm740, %v733, %v737
      %v742 = vand.u32 2147483647, %v697
      %vm743 = vcmp.eq.f32.partialorder %v742, 8.507059e+37
      %v744 = vand.u32 %v697, 2147483648
      %v745 = vor.u32 1.1754944e-38, %v744
      %v746 = vsel %vm743, %v745, %v741
      %v747 = vmul.f32 1.0, %v746
      %v748 = vrcp.pop %v698
      %v749 = vmul.f32 %v698, %v748
      %v750 = vsub.f32 1.0, %v749
      %v751 = vmul.f32 %v748, %v750
      %v752 = vadd.f32 %v748, %v751
      %vm753 = vweird.f32 %v698
      %vm754 = vweird.f32 %v748
      %vm755 = vmor %vm753, %vm754
      %v756 = vsel %vm755, %v748, %v752
      %v757 = vand.u32 2147483647, %v698
      %vm758 = vcmp.eq.f32.partialorder %v757, 8.507059e+37
      %v759 = vand.u32 %v698, 2147483648
      %v760 = vor.u32 1.1754944e-38, %v759
      %v761 = vsel %vm758, %v760, %v756
      %v762 = vmul.f32 1.0, %v761
      %v763 = vrcp.pop %v699
      %v764 = vmul.f32 %v699, %v763
      %v765 = vsub.f32 1.0, %v764
      %v766 = vmul.f32 %v763, %v765
      %v767 = vadd.f32 %v763, %v766
      %vm768 = vweird.f32 %v699
      %vm769 = vweird.f32 %v763
      %vm770 = vmor %vm768, %vm769
      %v771 = vsel %vm770, %v763, %v767
      %v772 = vand.u32 2147483647, %v699
      %vm773 = vcmp.eq.f32.partialorder %v772, 8.507059e+37
      %v774 = vand.u32 %v699, 2147483648
      %v775 = vor.u32 1.1754944e-38, %v774
      %v776 = vsel %vm773, %v775, %v771
      %v777 = vmul.f32 1.0, %v776
      %v778 = vrcp.pop %v700
      %v779 = vmul.f32 %v700, %v778
      %v780 = vsub.f32 1.0, %v779
      %v781 = vmul.f32 %v778, %v780
      %v782 = vadd.f32 %v778, %v781
      %vm783 = vweird.f32 %v700
      %vm784 = vweird.f32 %v778
      %vm785 = vmor %vm783, %vm784
      %v786 = vsel %vm785, %v778, %v782
      %v787 = vand.u32 2147483647, %v700
      %vm788 = vcmp.eq.f32.partialorder %v787, 8.507059e+37
      %v789 = vand.u32 %v700, 2147483648
      %v790 = vor.u32 1.1754944e-38, %v789
      %v791 = vsel %vm788, %v790, %v786
      %v792 = vmul.f32 1.0, %v791
      %v793 = vrcp.pop %v701
      %v794 = vmul.f32 %v701, %v793
      %v795 = vsub.f32 1.0, %v794
      %v796 = vmul.f32 %v793, %v795
      %v797 = vadd.f32 %v793, %v796
      %vm798 = vweird.f32 %v701
      %vm799 = vweird.f32 %v793
      %vm800 = vmor %vm798, %vm799
      %v801 = vsel %vm800, %v793, %v797
      %v802 = vand.u32 2147483647, %v701
      %vm803 = vcmp.eq.f32.partialorder %v802, 8.507059e+37
      %v804 = vand.u32 %v701, 2147483648
      %v805 = vor.u32 1.1754944e-38, %v804
      %v806 = vsel %vm803, %v805, %v801
      %v807 = vmul.f32 1.0, %v806
      %v808 = vrcp.pop %v702
      %v809 = vmul.f32 %v702, %v808
      %v810 = vsub.f32 1.0, %v809
      %v811 = vmul.f32 %v808, %v810
      %v812 = vadd.f32 %v808, %v811
      %vm813 = vweird.f32 %v702
      %vm814 = vweird.f32 %v808
      %vm815 = vmor %vm813, %vm814
      %v816 = vsel %vm815, %v808, %v812
      %v817 = vand.u32 2147483647, %v702
      %vm818 = vcmp.eq.f32.partialorder %v817, 8.507059e+37
      %v819 = vand.u32 %v702, 2147483648
      %v820 = vor.u32 1.1754944e-38, %v819
      %v821 = vsel %vm818, %v820, %v816
      %v822 = vmul.f32 1.0, %v821
      %v823 = vmul.f32 %v717, 1.0614054
      %v824 = vmul.f32 %v732, 1.0614054
      %v825 = vmul.f32 %v747, 1.0614054
      %v826 = vmul.f32 %v762, 1.0614054
      %v827 = vmul.f32 %v777, 1.0614054
      %v828 = vmul.f32 %v792, 1.0614054
      %v829 = vmul.f32 %v807, 1.0614054
      %v830 = vmul.f32 %v822, 1.0614054
      %v831 = vadd.f32 %v823, -1.4531521
      %v832 = vadd.f32 %v824, -1.4531521
      %v833 = vadd.f32 %v825, -1.4531521
      %v834 = vadd.f32 %v826, -1.4531521
      %v835 = vadd.f32 %v827, -1.4531521
      %v836 = vadd.f32 %v828, -1.4531521
      %v837 = vadd.f32 %v829, -1.4531521
      %v838 = vadd.f32 %v830, -1.4531521
      %v839 = vmul.f32 %v831, %v717
      %v840 = vmul.f32 %v832, %v732
      %v841 = vmul.f32 %v833, %v747
      %v842 = vmul.f32 %v834, %v762
      %v843 = vmul.f32 %v835, %v777
      %v844 = vmul.f32 %v836, %v792
      %v845 = vmul.f32 %v837, %v807
      %v846 = vmul.f32 %v838, %v822
      %v847 = vadd.f32 %v839, 1.4214138
      %v848 = vadd.f32 %v840, 1.4214138
      %v849 = vadd.f32 %v841, 1.4214138
      %v850 = vadd.f32 %v842, 1.4214138
      %v851 = vadd.f32 %v843, 1.4214138
      %v852 = vadd.f32 %v844, 1.4214138
      %v853 = vadd.f32 %v845, 1.4214138
      %v854 = vadd.f32 %v846, 1.4214138
      %v855 = vmul.f32 %v847, %v717
      %v856 = vmul.f32 %v848, %v732
      %v857 = vmul.f32 %v849, %v747
      %v858 = vmul.f32 %v850, %v762
      %v859 = vmul.f32 %v851, %v777
      %v860 = vmul.f32 %v852, %v792
      %v861 = vmul.f32 %v853, %v807
      %v862 = vmul.f32 %v854, %v822
      %v863 = vadd.f32 %v855, -0.28449672
      %v864 = vadd.f32 %v856, -0.28449672
      %v865 = vadd.f32 %v857, -0.28449672
      %v866 = vadd.f32 %v858, -0.28449672
      %v867 = vadd.f32 %v859, -0.28449672
      %v868 = vadd.f32 %v860, -0.28449672
      %v869 = vadd.f32 %v861, -0.28449672
      %v870 = vadd.f32 %v862, -0.28449672
      %v871 = vmul.f32 %v863, %v717
      %v872 = vmul.f32 %v864, %v732
      %v873 = vmul.f32 %v865, %v747
      %v874 = vmul.f32 %v866, %v762
      %v875 = vmul.f32 %v867, %v777
      %v876 = vmul.f32 %v868, %v792
      %v877 = vmul.f32 %v869, %v807
      %v878 = vmul.f32 %v870, %v822
      %v879 = vadd.f32 %v871, 0.2548296
      %v880 = vadd.f32 %v872, 0.2548296
      %v881 = vadd.f32 %v873, 0.2548296
      %v882 = vadd.f32 %v874, 0.2548296
      %v883 = vadd.f32 %v875, 0.2548296
      %v884 = vadd.f32 %v876, 0.2548296
      %v885 = vadd.f32 %v877, 0.2548296
      %v886 = vadd.f32 %v878, 0.2548296
      %v887 = vmul.f32 %v879, %v717
      %v888 = vmul.f32 %v880, %v732
      %v889 = vmul.f32 %v881, %v747
      %v890 = vmul.f32 %v882, %v762
      %v891 = vmul.f32 %v883, %v777
      %v892 = vmul.f32 %v884, %v792
      %v893 = vmul.f32 %v885, %v807
      %v894 = vmul.f32 %v886, %v822
      %v895 = vsub.f32 0.0, %v679
      %v896 = vsub.f32 0.0, %v680
      %v897 = vsub.f32 0.0, %v681
      %v898 = vsub.f32 0.0, %v682
      %v899 = vsub.f32 0.0, %v683
      %v900 = vsub.f32 0.0, %v684
      %v901 = vsub.f32 0.0, %v685
      %v902 = vsub.f32 0.0, %v686
      %v903 = vmul.f32 %v895, %v679
      %v904 = vmul.f32 %v896, %v680
      %v905 = vmul.f32 %v897, %v681
      %v906 = vmul.f32 %v898, %v682
      %v907 = vmul.f32 %v899, %v683
      %v908 = vmul.f32 %v900, %v684
      %v909 = vmul.f32 %v901, %v685
      %v910 = vmul.f32 %v902, %v686
      %v911 = vmul.f32 %v903, 1.442695
      %v912 = vpow.pop %v911
      %v913 = vmul.f32 %v904, 1.442695
      %v914 = vpow.pop %v913
      %v915 = vmul.f32 %v905, 1.442695
      %v916 = vpow.pop %v915
      %v917 = vmul.f32 %v906, 1.442695
      %v918 = vpow.pop %v917
      %v919 = vmul.f32 %v907, 1.442695
      %v920 = vpow.pop %v919
      %v921 = vmul.f32 %v908, 1.442695
      %v922 = vpow.pop %v921
      %v923 = vmul.f32 %v909, 1.442695
      %v924 = vpow.pop %v923
      %v925 = vmul.f32 %v910, 1.442695
      %v926 = vpow.pop %v925
      %v927 = vmul.f32 %v887, %v912
      %v928 = vmul.f32 %v888, %v914
      %v929 = vmul.f32 %v889, %v916
      %v930 = vmul.f32 %v890, %v918
      %v931 = vmul.f32 %v891, %v920
      %v932 = vmul.f32 %v892, %v922
      %v933 = vmul.f32 %v893, %v924
      %v934 = vmul.f32 %v894, %v926
      %v935 = vsub.f32 1.0, %v927
      %v936 = vsub.f32 1.0, %v928
      %v937 = vsub.f32 1.0, %v929
      %v938 = vsub.f32 1.0, %v930
      %v939 = vsub.f32 1.0, %v931
      %v940 = vsub.f32 1.0, %v932
      %v941 = vsub.f32 1.0, %v933
      %v942 = vsub.f32 1.0, %v934
      %vm943 = vcmp.ge.f32.partialorder %v671, 0.0
      %vm944 = vcmp.ge.f32.partialorder %v672, 0.0
      %vm945 = vcmp.ge.f32.partialorder %v673, 0.0
      %vm946 = vcmp.ge.f32.partialorder %v674, 0.0
      %vm947 = vcmp.ge.f32.partialorder %v675, 0.0
      %vm948 = vcmp.ge.f32.partialorder %v676, 0.0
      %vm949 = vcmp.ge.f32.partialorder %v677, 0.0
      %vm950 = vcmp.ge.f32.partialorder %v678, 0.0
      %v951 = vsub.f32 0.0, %v935
      %v952 = vsub.f32 0.0, %v936
      %v953 = vsub.f32 0.0, %v937
      %v954 = vsub.f32 0.0, %v938
      %v955 = vsub.f32 0.0, %v939
      %v956 = vsub.f32 0.0, %v940
      %v957 = vsub.f32 0.0, %v941
      %v958 = vsub.f32 0.0, %v942
      %v959 = vsel %vm943, %v935, %v951
      %v960 = vsel %vm944, %v936, %v952
      %v961 = vsel %vm945, %v937, %v953
      %v962 = vsel %vm946, %v938, %v954
      %v963 = vsel %vm947, %v939, %v955
      %v964 = vsel %vm948, %v940, %v956
      %v965 = vsel %vm949, %v941, %v957
      %v966 = vsel %vm950, %v942, %v958
      %v967 = vadd.f32 %v959, 1.0
      %v968 = vadd.f32 %v960, 1.0
      %v969 = vadd.f32 %v961, 1.0
      %v970 = vadd.f32 %v962, 1.0
      %v971 = vadd.f32 %v963, 1.0
      %v972 = vadd.f32 %v964, 1.0
      %v973 = vadd.f32 %v965, 1.0
      %v974 = vadd.f32 %v966, 1.0
      %v975 = vmul.f32 %v663, %v967
      %v976 = vmul.f32 %v664, %v968
      %v977 = vmul.f32 %v665, %v969
      %v978 = vmul.f32 %v666, %v970
      %v979 = vmul.f32 %v667, %v971
      %v980 = vmul.f32 %v668, %v972
      %v981 = vmul.f32 %v669, %v973
      %v982 = vmul.f32 %v670, %v974
      %v983 = vld [vmem:[#allocation11] sm:$0xff]
      %v984 = vld [vmem:[#allocation11 + $0x8] sm:$0xff]
      %v985 = vld [vmem:[#allocation11 + $0x10] sm:$0xff]
      %v986 = vld [vmem:[#allocation11 + $0x18] sm:$0xff]
      %v987 = vld [vmem:[#allocation11 + $0x20] sm:$0xff]
      %v988 = vld [vmem:[#allocation11 + $0x28] sm:$0xff]
      %v989 = vld [vmem:[#allocation11 + $0x30] sm:$0xff]
      %v990 = vld [vmem:[#allocation11 + $0x38] sm:$0xff]
      %v991 = vld [vmem:[#allocation11 + $0x40] sm:$0xff]
      %v992 = vld [vmem:[#allocation11 + $0x48] sm:$0xff]
      %v993 = vld [vmem:[#allocation11 + $0x50] sm:$0xff]
      %v994 = vld [vmem:[#allocation11 + $0x58] sm:$0xff]
      %v995 = vld [vmem:[#allocation11 + $0x60] sm:$0xff]
      %v996 = vld [vmem:[#allocation11 + $0x68] sm:$0xff]
      %v997 = vld [vmem:[#allocation11 + $0x70] sm:$0xff]
      %v998 = vld [vmem:[#allocation11 + $0x78] sm:$0xff]
      %v999 = vld [vmem:[%s8] sm:$0x1]
      %v1001 = vperm.slane %v999, 0
      %1003 = vmatpush.msra.mxu0 %v998
      %1004 = vmatpush.msra.mxu0 %v997
      %1005 = vmatpush.msra.mxu0 %v996
      %1006 = vmatpush.msra.mxu0 %v995
      %1007 = vmatpush.msra.mxu0 %v994
      %1008 = vmatpush.msra.mxu0 %v993
      %1009 = vmatpush.msra.mxu0 %v992
      %1010 = vmatpush.msra.mxu0 %v991
      %1011 = vmatpush.msra.mxu0 %v990
      %1012 = vmatpush.msra.mxu0 %v989
      %1013 = vmatpush.msra.mxu0 %v988
      %1014 = vmatpush.msra.mxu0 %v987
      %1015 = vmatpush.msra.mxu0 %v986
      %1016 = vmatpush.msra.mxu0 %v985
      %1017 = vmatpush.msra.mxu0 %v984
      %1018 = vmatpush.msra.mxu0 %v983
      %1019 = vmatmul.f32.gmra.mxu0 %v975
      %v1020 = vpop.f32.mrf.mxu0
      %v1021 = vadd.f32 %v1001, %v1020
      %1022 = vmatmul.f32.gmra.mxu0 %v976
      %v1023 = vpop.f32.mrf.mxu0
      %v1024 = vadd.f32 %v1001, %v1023
      %1025 = vmatmul.f32.gmra.mxu0 %v977
      %v1026 = vpop.f32.mrf.mxu0
      %v1027 = vadd.f32 %v1001, %v1026
      %1028 = vmatmul.f32.gmra.mxu0 %v978
      %v1029 = vpop.f32.mrf.mxu0
      %v1030 = vadd.f32 %v1001, %v1029
      %1031 = vmatmul.f32.gmra.mxu0 %v979
      %v1032 = vpop.f32.mrf.mxu0
      %v1033 = vadd.f32 %v1001, %v1032
      %1034 = vmatmul.f32.gmra.mxu0 %v980
      %v1035 = vpop.f32.mrf.mxu0
      %v1036 = vadd.f32 %v1001, %v1035
      %1037 = vmatmul.f32.gmra.mxu0 %v981
      %v1038 = vpop.f32.mrf.mxu0
      %v1039 = vadd.f32 %v1001, %v1038
      %1040 = vmatmul.f32.gmra.mxu0 %v982
      %v1041 = vpop.f32.mrf.mxu0
      %v1042 = vadd.f32 %v1001, %v1041
      %1043 = vdwg.mxu0
      %v1044 = vld [vmem:[#allocation8] sm:$0xff]
      %v1045 = vld [vmem:[#allocation8 + $0x8] sm:$0xff]
      %v1046 = vld [vmem:[#allocation8 + $0x10] sm:$0xff]
      %v1047 = vld [vmem:[#allocation8 + $0x18] sm:$0xff]
      %v1048 = vld [vmem:[#allocation8 + $0x20] sm:$0xff]
      %v1049 = vld [vmem:[#allocation8 + $0x28] sm:$0xff]
      %v1050 = vld [vmem:[#allocation8 + $0x30] sm:$0xff]
      %v1051 = vld [vmem:[#allocation8 + $0x38] sm:$0xff]
      %v1052 = vadd.f32 %v1044, %v1021
      %v1053 = vadd.f32 %v1045, %v1024
      %v1054 = vadd.f32 %v1046, %v1027
      %v1055 = vadd.f32 %v1047, %v1030
      %v1056 = vadd.f32 %v1048, %v1033
      %v1057 = vadd.f32 %v1049, %v1036
      %v1058 = vadd.f32 %v1050, %v1039
      %v1059 = vadd.f32 %v1051, %v1042
      %1060 = vst [vmem:[#allocation12] sm:$0xff] %v1052
      %1061 = vst [vmem:[#allocation12 + $0x8] sm:$0xff] %v1053
      %1062 = vst [vmem:[#allocation12 + $0x10] sm:$0xff] %v1054
      %1063 = vst [vmem:[#allocation12 + $0x18] sm:$0xff] %v1055
      %1064 = vst [vmem:[#allocation12 + $0x20] sm:$0xff] %v1056
      %1065 = vst [vmem:[#allocation12 + $0x28] sm:$0xff] %v1057
      %1066 = vst [vmem:[#allocation12 + $0x30] sm:$0xff] %v1058
      %1067 = vst [vmem:[#allocation12 + $0x38] sm:$0xff] %v1059
    $region65: #{tpu_custom_call.1} parent=1 // pred_fallthru
      _
    // Predicated region
    $region66: #{tpu_custom_call.1} parent=1 // pred_check
      _
    $region67: #{tpu_custom_call.1} parent=1 // pred_check_branch
      %1069 = sbr.rel (0) target = $region69
    $region68: #{tpu_custom_call.1} parent=1 // pred_region
      %1071 = vsyncadd [#allocation5], 0
      %s1072 = sshll.u32 [#allocation12], 4
      %s1073 = int_to_ptr.vmem [resolvable:$true] %s1072
      %s1074 = sshll.u32 %s9, 4
      %s1075 = int_to_ptr.hbm [resolvable:$true] %s1074
      %1080 = dma.vmem_to_hbm [thread:$0]  %s1073, 1024, %s1075, [#allocation5], 128, 128, 8
    $region69: #{tpu_custom_call.1} parent=1 // pred_fallthru
      _
    // Predicated region
    $region70: #{tpu_custom_call.1} parent=1 // pred_check
      _
    $region71: #{tpu_custom_call.1} parent=1 // pred_check_branch
      %1082 = sbr.rel (0) target = $region73
    $region72: #{tpu_custom_call.1} parent=1 // pred_region
      %1084 = dma.done [#allocation5], 1024
    $region73: #{tpu_custom_call.1} parent=1 // pred_fallthru
      _
    %1085 = vsyncpa [#allocation4], 1
    %1086 = vsyncpa [#allocation7], 1
    %1087 = vsyncpa [#allocation10], 1
    %1088 = vsyncpa [#allocation5], 1

</llo_original>
